<compile_context>
chip_gen: v5e
topology: v5e:2x2
jax: 0.10.0
libtpu: 0.0.40
codegen_flags: <defaults>
</compile_context>

<pallas_src>
import math
from functools import partial

import jax
import jax.numpy as jnp
from jax import lax
from jax.experimental import pallas as pl
from jax.experimental.pallas import tpu as pltpu


# ---------------------------------------------------------------------------
# tiling helpers
# ---------------------------------------------------------------------------

_LANE = 128
_SUBLANE = 8
_VMEM_BUDGET = 44 * (1 << 20)   # conservative: fits v7x's 64 MiB physical VMEM


def _round_up(x, m):
    return ((x + m - 1) // m) * m


def _pick_lane_tile(dim, target):
    """Largest multiple of 128 <= target that divides `dim` exactly; if `dim`
    is not a multiple of 128, fall back to the full dim (a full-extent block
    is always a legal BlockSpec)."""
    if dim % _LANE != 0:
        return dim
    t = max(_LANE, (min(target, dim) // _LANE) * _LANE)
    while dim % t != 0:
        t -= _LANE
    return t


def _vmem_limit(footprint_bytes):
    return int(min(max(3 * footprint_bytes // 2 + (2 << 20), 16 << 20), 64 << 20))


# ---------------------------------------------------------------------------
# Kernel 1: fused RMSNorm (hoisted, once per M tile) + up_proj (+bias) + act
# ---------------------------------------------------------------------------

def _norm_up_act_kernel(*refs, eps, act, has_bias):
    if has_bias:
        x_ref, g_ref, w_ref, b_ref, o_ref, h_ref = refs
    else:
        x_ref, g_ref, w_ref, o_ref, h_ref = refs
        b_ref = None

    @pl.when(pl.program_id(1) == 0)
    def _():
        # RMSNorm once per M tile; reused for every N tile of this row block.
        xf = x_ref[...].astype(jnp.float32)                  # (tm, H)
        var = jnp.mean(xf * xf, axis=-1, keepdims=True)
        normed = (xf * lax.rsqrt(var + eps)).astype(x_ref.dtype)
        h_ref[...] = (g_ref[...] * normed).astype(h_ref.dtype)

    # up_proj: (tm, H) @ (H, tn) on the MXU, f32 accumulation.
    acc = lax.dot_general(h_ref[...], w_ref[...], (((1,), (0,)), ((), ())),
                          preferred_element_type=jnp.float32)
    if has_bias:
        acc = acc + b_ref[...].astype(jnp.float32)
    o_ref[...] = act(acc).astype(o_ref.dtype)                # EUP sigmoid is free filler


def fused_norm_up_act(x2d, gamma, w_up_t, b_up, *, eps, act, tm,
                      tn_target=512, vmem_budget=_VMEM_BUDGET):
    M, H = x2d.shape
    N = w_up_t.shape[1]
    assert M % tm == 0
    itemsize = x2d.dtype.itemsize
    has_bias = b_up is not None

    def footprint(tn_):
        dbl = 2 * (tm * H + H + H * tn_ + tn_ + tm * tn_) * itemsize
        return dbl + tm * H * itemsize + 8 * tn_   # + scratch + f32 bias buffers

    tn = _pick_lane_tile(N, tn_target)
    while footprint(tn) > vmem_budget and N % _LANE == 0 and tn > _LANE:
        tn = _pick_lane_tile(N, max(_LANE, tn // 2))
    # TODO(synk): if the (tm, H) row block itself overflows VMEM (very large
    # H), split the norm into its own one-pass kernel and K-tile the up_proj.

    grid = (M // tm, N // tn)

    in_specs = [
        pl.BlockSpec((tm, H), lambda i, j: (i, 0)),   # x row block (constant over j)
        pl.BlockSpec((1, H), lambda i, j: (0, 0)),    # RMSNorm weight
        pl.BlockSpec((H, tn), lambda i, j: (0, j)),   # up_proj weight (pre-transposed)
    ]
    args = [x2d, gamma.reshape(1, H), w_up_t]
    if has_bias:
        in_specs.append(pl.BlockSpec((1, tn), lambda i, j: (0, j)))
        args.append(b_up.reshape(1, N))

    cost = pl.CostEstimate(
        flops=2 * M * N * H + 4 * M * H,
        transcendentals=M * N + M,
        bytes_accessed=(M * H + H + (M // tm) * H * N + N + M * N) * itemsize,
    )

    return pl.pallas_call(
        partial(_norm_up_act_kernel, eps=eps, act=act, has_bias=has_bias),
        out_shape=jax.ShapeDtypeStruct((M, N), x2d.dtype),
        grid=grid,
        in_specs=in_specs,
        out_specs=pl.BlockSpec((tm, tn), lambda i, j: (i, j)),
        scratch_shapes=[pltpu.VMEM((tm, H), x2d.dtype)],   # normalized row block
        compiler_params=pltpu.CompilerParams(
            dimension_semantics=("parallel", "arbitrary"),
            vmem_limit_bytes=_vmem_limit(footprint(tn))),
        cost_estimate=cost,
    )(*args)


# ---------------------------------------------------------------------------
# Kernel 2: K-tiled down_proj (+bias) + residual add
# ---------------------------------------------------------------------------

def _down_res_kernel(*refs, has_bias):
    if has_bias:
        h_ref, w_ref, x_ref, b_ref, o_ref, acc_ref = refs
    else:
        h_ref, w_ref, x_ref, o_ref, acc_ref = refs
        b_ref = None

    k = pl.program_id(2)

    @pl.when(k == 0)
    def _():
        acc_ref[...] = jnp.zeros_like(acc_ref)

    acc_ref[...] += lax.dot_general(
        h_ref[...], w_ref[...], (((1,), (0,)), ((), ())),
        preferred_element_type=jnp.float32)

    @pl.when(k == pl.num_programs(2) - 1)
    def _():
        r = acc_ref[...]
        if has_bias:
            r = r + b_ref[...].astype(jnp.float32)
        o_ref[...] = (r + x_ref[...].astype(jnp.float32)).astype(o_ref.dtype)


def fused_down_residual(h2d, w_down_t, x2d, b_down, *, tm,
                        tn_target=512, tk_target=1024,
                        vmem_budget=_VMEM_BUDGET):
    M, K = h2d.shape
    N = w_down_t.shape[1]
    assert M % tm == 0
    itemsize = h2d.dtype.itemsize
    has_bias = b_down is not None

    def footprint(tk_, tn_):
        dbl = 2 * (tm * tk_ + tk_ * tn_ + 2 * tm * tn_) * itemsize + 8 * tn_
        return dbl + 4 * tm * tn_          # + f32 accumulator scratch

    tn = _pick_lane_tile(N, tn_target)
    tk = _pick_lane_tile(K, tk_target)
    while footprint(tk, tn) > vmem_budget:
        if tk > _LANE and K % _LANE == 0 and tk >= tn:
            tk = _pick_lane_tile(K, max(_LANE, tk // 2))
        elif tn > _LANE and N % _LANE == 0:
            tn = _pick_lane_tile(N, max(_LANE, tn // 2))
        else:
            break

    grid = (M // tm, N // tn, K // tk)

    # Note: the residual / bias blocks are constant across k; Pallas only
    # re-DMAs them when (i, j) changes.  (pl.Buffered(1) could trim one
    # buffer each on v7x, kept default for portability.)
    in_specs = [
        pl.BlockSpec((tm, tk), lambda i, j, k: (i, k)),   # activations h
        pl.BlockSpec((tk, tn), lambda i, j, k: (k, j)),   # down_proj weight (pre-transposed)
        pl.BlockSpec((tm, tn), lambda i, j, k: (i, j)),   # residual x tile
    ]
    args = [h2d, w_down_t, x2d]
    if has_bias:
        in_specs.append(pl.BlockSpec((1, tn), lambda i, j, k: (0, j)))
        args.append(b_down.reshape(1, N))

    cost = pl.CostEstimate(
        flops=2 * M * N * K + 2 * M * N,
        transcendentals=0,
        bytes_accessed=(M * K + (M // tm) * K * N + 2 * M * N + N) * itemsize,
    )

    return pl.pallas_call(
        partial(_down_res_kernel, has_bias=has_bias),
        out_shape=jax.ShapeDtypeStruct((M, N), x2d.dtype),
        grid=grid,
        in_specs=in_specs,
        out_specs=pl.BlockSpec((tm, tn), lambda i, j, k: (i, j)),
        scratch_shapes=[pltpu.VMEM((tm, tn), jnp.float32)],
        compiler_params=pltpu.CompilerParams(
            dimension_semantics=("parallel", "parallel", "arbitrary"),
            vmem_limit_bytes=_vmem_limit(footprint(tk, tn))),
        cost_estimate=cost,
    )(*args)


# ---------------------------------------------------------------------------
# Module wrapper
# ---------------------------------------------------------------------------

def prepare_params(torch_params, *, compute_dtype=jnp.bfloat16):
    """One-time prep: cast to the MXU-native compute dtype (bf16 recommended)
    and transpose torch nn.Linear weights (out,in) -> (in,out).  Biases stay
    f32 (added to the f32 accumulator in-kernel)."""
    cd = compute_dtype
    params = {
        "norm_weight": jnp.asarray(torch_params["norm_weight"]).astype(cd),
        "up_w_t": jnp.asarray(torch_params["up_proj_weight"]).astype(cd).T,      # (H, I)
        "down_w_t": jnp.asarray(torch_params["down_proj_weight"]).astype(cd).T,  # (I, H)
    }
    if torch_params.get("up_proj_bias") is not None:
        params["up_b"] = jnp.asarray(torch_params["up_proj_bias"]).astype(jnp.float32)
    if torch_params.get("down_proj_bias") is not None:
        params["down_b"] = jnp.asarray(torch_params["down_proj_bias"]).astype(jnp.float32)
    return params


def min_gru_mlp_forward(params, x, *, eps=1e-6, act=jax.nn.silu, tm_target=256):
    """MinGRUMLP.forward: down_proj(act(up_proj(rmsnorm(x)))) + x."""
    # TODO(synk): ACT2FN lookup -- silu used by default; pass a different
    # `act` for other config.mlp_hidden_act values.
    B, S, H = x.shape
    M = B * S
    x2d = x.reshape(M, H).astype(params["up_w_t"].dtype)

    # Sublane-aligned M tile; zero-pad M so the tile divides exactly (padded
    # rows produce finite values and are sliced away below).
    tm = min(_round_up(tm_target, _SUBLANE), _round_up(M, _SUBLANE))
    M_pad = _round_up(M, tm)
    if M_pad != M:
        x2d = jnp.pad(x2d, ((0, M_pad - M), (0, 0)))

    h = fused_norm_up_act(x2d, params["norm_weight"], params["up_w_t"],
                          params.get("up_b"), eps=eps, act=act, tm=tm)
    out = fused_down_residual(h, params["down_w_t"], x2d,
                              params.get("down_b"), tm=tm)
    if M_pad != M:
        out = out[:M]
    # TODO(synk): for decode-sized M, fuse both kernels into one per-M-tile
    # pipeline (keep the (tm, I) intermediate in VMEM, skip the HBM round-trip).
    return out.reshape(B, S, H).astype(x.dtype)


# ---------------------------------------------------------------------------
# Pure-JAX reference (torch-layout weights, same dtype transitions as kernels)
# ---------------------------------------------------------------------------

def reference_forward(torch_params, x, *, eps=1e-6, act=jax.nn.silu,
                      compute_dtype=jnp.float32):
    cd = compute_dtype
    B, S, H = x.shape
    gamma = jnp.asarray(torch_params["norm_weight"]).astype(cd)
    w_up = jnp.asarray(torch_params["up_proj_weight"]).astype(cd)    # (I, H)
    w_dn = jnp.asarray(torch_params["down_proj_weight"]).astype(cd)  # (H, I)

    xc = x.reshape(B * S, H).astype(cd)
    xf = xc.astype(jnp.float32)
    var = jnp.mean(xf * xf, axis=-1, keepdims=True)
    normed = (xf * lax.rsqrt(var + eps)).astype(cd)
    hmat = (gamma * normed).astype(cd)

    acc = jnp.dot(hmat, w_up.T, preferred_element_type=jnp.float32)
    if torch_params.get("up_proj_bias") is not None:
        acc = acc + jnp.asarray(torch_params["up_proj_bias"]).astype(jnp.float32)
    hact = act(acc).astype(cd)

    acc2 = jnp.dot(hact, w_dn.T, preferred_element_type=jnp.float32)
    if torch_params.get("down_proj_bias") is not None:
        acc2 = acc2 + jnp.asarray(torch_params["down_proj_bias"]).astype(jnp.float32)
    out = (acc2 + xc.astype(jnp.float32)).astype(cd)
    return out.reshape(B, S, H).astype(x.dtype)


# ---------------------------------------------------------------------------
# Main
# ---------------------------------------------------------------------------

if __name__ == "__main__":
    # small config consistent with the module: hidden 32, expansion 4 -> intermediate 128
    B, S, H = 2, 8, 32
    expansion_factor = 4
    I = H * expansion_factor
    eps = 1e-6

    key = jax.random.PRNGKey(0)
    kx, kup, kdn, kbu, kbd = jax.random.split(key, 5)

    x_f32 = jax.random.normal(kx, (B, S, H), dtype=jnp.float32)

    # torch-layout parameters (nn.Linear weight is (out_features, in_features))
    torch_params = {
        "norm_weight": 1.0 + 0.01 * jnp.arange(H, dtype=jnp.float32),
        "up_proj_weight": 0.05 * jax.random.normal(kup, (I, H), jnp.float32),
        "up_proj_bias": 0.05 * jax.random.normal(kbu, (I,), jnp.float32),
        "down_proj_weight": 0.05 * jax.random.normal(kdn, (H, I), jnp.float32),
        "down_proj_bias": 0.05 * jax.random.normal(kbd, (H,), jnp.float32),
    }

    # ---- f32 path: tight numeric check against the reference -------------
    params_f32 = prepare_params(torch_params, compute_dtype=jnp.float32)
    out_f32 = jax.block_until_ready(
        min_gru_mlp_forward(params_f32, x_f32, eps=eps, act=jax.nn.silu))
    ref_f32 = reference_forward(torch_params, x_f32, eps=eps,
                                act=jax.nn.silu, compute_dtype=jnp.float32)
    assert out_f32.shape == (B, S, H)
    err_f32 = float(jnp.max(jnp.abs(out_f32 - ref_f32)))
    assert jnp.allclose(out_f32, ref_f32, atol=5e-4, rtol=5e-4), \
        f"f32 mismatch vs reference (max err {err_f32})"

    # ---- bf16 path: MXU-native pipeline (intermediate h kept in bf16) ----
    params_bf16 = prepare_params(torch_params, compute_dtype=jnp.bfloat16)
    x_bf16 = x_f32.astype(jnp.bfloat16)
    out_bf16 = jax.block_until_ready(
        min_gru_mlp_forward(params_bf16, x_bf16, eps=eps, act=jax.nn.silu))
    ref_bf16 = reference_forward(torch_params, x_bf16, eps=eps,
                                 act=jax.nn.silu, compute_dtype=jnp.bfloat16)
    err_bf16 = float(jnp.max(jnp.abs(out_bf16.astype(jnp.float32)
                                     - ref_bf16.astype(jnp.float32))))
    assert jnp.allclose(out_bf16.astype(jnp.float32),
                        ref_bf16.astype(jnp.float32),
                        atol=3e-2, rtol=3e-2), \
        f"bf16 mismatch vs reference (max err {err_bf16})"

    print("KERNEL_OK")
</pallas_src>

<mosaic_0001>
module attributes {stable_mosaic.version = 11 : i64} {
  func.func @_norm_up_act_kernel(%arg0: i32, %arg1: i32, %arg2: memref<16x32xf32, #tpu.memory_space<vmem>>, %arg3: memref<1x32xf32, #tpu.memory_space<vmem>>, %arg4: memref<32x128xf32, #tpu.memory_space<vmem>>, %arg5: memref<1x128xf32, #tpu.memory_space<vmem>>, %arg6: memref<16x128xf32, #tpu.memory_space<vmem>>, %arg7: memref<16x32xf32, #tpu.memory_space<vmem>>) attributes {dimension_semantics = [#tpu.dimension_semantics<parallel>, #tpu.dimension_semantics<arbitrary>], iteration_bounds = array<i64: 1, 1>, scalar_prefetch = 0 : i64, scratch_operands = 1 : i64, tpu.core_type = #tpu.core_type<tc>, window_params = [{transform_indices = @transform_0, window_bounds = array<i64: 16, 32>}, {pipeline_mode = #tpu.pipeline_mode<synchronous>, transform_indices = @transform_1, window_bounds = array<i64: 1, 32>}, {transform_indices = @transform_2, window_bounds = array<i64: 32, 128>}, {transform_indices = @transform_3, window_bounds = array<i64: 1, 128>}, {transform_indices = @transform_4, window_bounds = array<i64: 16, 128>}]} {
    %c0_i32 = arith.constant 0 : i32
    %0 = arith.cmpi eq, %arg1, %c0_i32 : i32
    %1 = arith.extui %0 : i1 to i32
    %c0_i32_0 = arith.constant 0 : i32
    %2 = arith.cmpi ne, %1, %c0_i32_0 : i32
    scf.if %2 {
      %c0_9 = arith.constant 0 : index
      %c0_10 = arith.constant 0 : index
      %16 = vector.load %arg2[%c0_9, %c0_10] : memref<16x32xf32, #tpu.memory_space<vmem>>, vector<16x32xf32>
      %17 = arith.mulf %16, %16 : vector<16x32xf32>
      %cst_11 = arith.constant dense<0.000000e+00> : vector<16xf32>
      %18 = vector.multi_reduction <add>, %17, %cst_11 [1] : vector<16x32xf32> to vector<16xf32>
      %19 = vector.shape_cast %18 : vector<16xf32> to vector<16x1xf32>
      %cst_12 = arith.constant 3.200000e+01 : f32
      %20 = vector.broadcast %cst_12 : f32 to vector<16x1xf32>
      %21 = arith.divf %19, %20 : vector<16x1xf32>
      %cst_13 = arith.constant 9.99999997E-7 : f32
      %22 = vector.broadcast %cst_13 : f32 to vector<16x1xf32>
      %23 = arith.addf %21, %22 : vector<16x1xf32>
      %24 = math.rsqrt %23 : vector<16x1xf32>
      %25 = vector.broadcast %24 : vector<16x1xf32> to vector<16x32xf32>
      %26 = arith.mulf %16, %25 : vector<16x32xf32>
      %c0_14 = arith.constant 0 : index
      %c0_15 = arith.constant 0 : index
      %27 = vector.load %arg3[%c0_14, %c0_15] : memref<1x32xf32, #tpu.memory_space<vmem>>, vector<1x32xf32>
      %28 = vector.broadcast %27 : vector<1x32xf32> to vector<16x32xf32>
      %29 = arith.mulf %28, %26 : vector<16x32xf32>
      %c0_16 = arith.constant 0 : index
      %c0_17 = arith.constant 0 : index
      %30 = vector.load %arg7[%c0_16, %c0_17] : memref<16x32xf32, #tpu.memory_space<vmem>>, vector<16x32xf32>
      tpu.vector_store %arg7[%c0_16, %c0_17], %29 {strides = array<i32>} : memref<16x32xf32, #tpu.memory_space<vmem>>, vector<16x32xf32>,
    } else {
    }
    %c0 = arith.constant 0 : index
    %c0_1 = arith.constant 0 : index
    %3 = vector.load %arg7[%c0, %c0_1] : memref<16x32xf32, #tpu.memory_space<vmem>>, vector<16x32xf32>
    %c0_2 = arith.constant 0 : index
    %c0_3 = arith.constant 0 : index
    %4 = vector.load %arg4[%c0_2, %c0_3] : memref<32x128xf32, #tpu.memory_space<vmem>>, vector<32x128xf32>
    %cst = arith.constant dense<0.000000e+00> : vector<16x128xf32>
    %5 = tpu.matmul %3, %4, %cst {dimension_numbers = #tpu.dot_dimension_numbers<[1], [0], [0], [1], [0, 0, 1, 1], [], []>} : vector<16x32xf32>, vector<32x128xf32>, vector<16x128xf32> -> vector<16x128xf32>
    %c0_4 = arith.constant 0 : index
    %c0_5 = arith.constant 0 : index
    %6 = vector.load %arg5[%c0_4, %c0_5] : memref<1x128xf32, #tpu.memory_space<vmem>>, vector<1x128xf32>
    %7 = vector.broadcast %6 : vector<1x128xf32> to vector<16x128xf32>
    %8 = arith.addf %5, %7 : vector<16x128xf32>
    %9 = arith.negf %8 : vector<16x128xf32>
    %10 = math.exp %9 : vector<16x128xf32>
    %cst_6 = arith.constant 1.000000e+00 : f32
    %11 = vector.broadcast %cst_6 : f32 to vector<16x128xf32>
    %12 = arith.addf %11, %10 : vector<16x128xf32>
    %13 = arith.divf %11, %12 : vector<16x128xf32>
    %14 = arith.mulf %8, %13 : vector<16x128xf32>
    %c0_7 = arith.constant 0 : index
    %c0_8 = arith.constant 0 : index
    %15 = vector.load %arg6[%c0_7, %c0_8] : memref<16x128xf32, #tpu.memory_space<vmem>>, vector<16x128xf32>
    tpu.vector_store %arg6[%c0_7, %c0_8], %14 {strides = array<i32>} : memref<16x128xf32, #tpu.memory_space<vmem>>, vector<16x128xf32>,
    return
  }
  func.func @transform_0(%arg0: i32, %arg1: i32) -> (i32, i32) {
    %c0_i32 = arith.constant 0 : i32
    %c0_i32_0 = arith.constant 0 : i32
    return %arg0, %c0_i32 : i32, i32
  }
  func.func @transform_1(%arg0: i32, %arg1: i32) -> (i32, i32) {
    %c0_i32 = arith.constant 0 : i32
    %c0_i32_0 = arith.constant 0 : i32
    %c0_i32_1 = arith.constant 0 : i32
    return %c0_i32, %c0_i32_0 : i32, i32
  }
  func.func @transform_2(%arg0: i32, %arg1: i32) -> (i32, i32) {
    %c0_i32 = arith.constant 0 : i32
    %c0_i32_0 = arith.constant 0 : i32
    return %c0_i32, %arg1 : i32, i32
  }
  func.func @transform_3(%arg0: i32, %arg1: i32) -> (i32, i32) {
    %c0_i32 = arith.constant 0 : i32
    %c0_i32_0 = arith.constant 0 : i32
    return %c0_i32, %arg1 : i32, i32
  }
  func.func @transform_4(%arg0: i32, %arg1: i32) -> (i32, i32) {
    %c0_i32 = arith.constant 0 : i32
    return %arg0, %arg1 : i32, i32
  }
}

</mosaic_0001>

<llo_original>
// kernel: tpu_custom_call.1
$region0: #{tpu_custom_call.1}
  #allocation0 [shape = 'u32[]', space=smem, size = 0x4, offset = 0x4, fixed_abs, tag = 'smem constant byte address 0x4 - core index']
  #allocation1 [shape = 'u32[72,128]{1,0:T(1,128)}', space=vmem, size = 0x9000, scoped, tag = 'internal scratch']
  #allocation2 [shape = 'f32[16,32]{1,0:T(8,128)}', space=vmem, size = 0x2000, scoped, tag = 'scratch operand']
  %s0 = inlined_call_operand.hbm [shape: f32[16,32], index: 0, kind: input, shape index: {}]
  %s1 = inlined_call_operand.hbm [shape: f32[1,32], index: 1, kind: input, shape index: {}]
  %s2 = inlined_call_operand.hbm [shape: f32[32,128], index: 2, kind: input, shape index: {}]
  %s3 = inlined_call_operand.vmem [shape: f32[1,128], index: 3, kind: input, shape index: {}]
  %s4 = inlined_call_operand.hbm [shape: f32[16,128], index: 4, kind: output, shape index: {}]
  %s5 = sld [smem:[#allocation0]]
  $region42: #{tpu_custom_call.1} parent=0
    _
  %s7 = ssub.s32 1, %s5
  %s8 = scalar_select 0, %s7, %s5
  $region1: #{tpu_custom_call.1} parent=0
    #allocation3 [shape = 'u8[8192]{0}', space=vmem, size = 0x2000, scoped, tag = 'input window, operand 0, single buffered']
    #allocation4 [shape = 's32[1]{0}', space=sflag, size = 0x4, scoped, tag = 'scoped memory for tpu_custom_call.1']
    #allocation5 [shape = 's32[1]{0}', space=sflag, size = 0x4, scoped, tag = 'scoped memory for tpu_custom_call.1']
    #allocation6 [shape = 'u8[512]{0}', space=vmem, size = 0x400, scoped, tag = 'input window, operand 1, single buffered']
    #allocation7 [shape = 's32[1]{0}', space=sflag, size = 0x4, scoped, tag = 'scoped memory for tpu_custom_call.1']
    #allocation8 [shape = 'u8[16384]{0}', space=vmem, size = 0x4000, scoped, tag = 'input window, operand 2, single buffered']
    #allocation9 [shape = 'u8[8192]{0}', space=vmem, size = 0x2000, scoped, tag = 'output window, operand 0, single buffered']
    %9 = vsyncpa [#allocation4], 0
    %10 = vsyncpa [#allocation7], 0
    %11 = vsyncpa [#allocation5], 0
    // Predicated region
    $region2: #{tpu_custom_call.1} parent=1 // pred_check
      _
    $region3: #{tpu_custom_call.1} parent=1 // pred_check_branch
      %13 = sbr.rel (0) target = $region5
    $region4: #{tpu_custom_call.1} parent=1 // pred_region
      %15 = vsyncadd [#allocation4], 0
      %s16 = sshll.u32 %s0, 4
      %s17 = int_to_ptr.hbm [resolvable:$true] %s16
      %s18 = sshll.u32 [#allocation3], 4
      %s19 = int_to_ptr.vmem [resolvable:$true] %s18
      %24 = dma.hbm_to_vmem [thread:$0]  %s17, 256, %s19, [#allocation4], 128, 128, 8
    $region5: #{tpu_custom_call.1} parent=1 // pred_fallthru
      _
    // Predicated region
    $region6: #{tpu_custom_call.1} parent=1 // pred_check
      _
    $region7: #{tpu_custom_call.1} parent=1 // pred_check_branch
      %26 = sbr.rel (0) target = $region9
    $region8: #{tpu_custom_call.1} parent=1 // pred_region
      %28 = vsyncadd [#allocation7], 0
      %s30 = sshll.u32 %s1, 4
      %s31 = int_to_ptr.hbm [resolvable:$true] %s30
      %s32 = sshll.u32 [#allocation6], 4
      %s33 = int_to_ptr.vmem [resolvable:$true] %s32
      %35 = dma.hbm_to_vmem [thread:$0]  %s31, 16, %s33, [#allocation7]
    $region9: #{tpu_custom_call.1} parent=1 // pred_fallthru
      _
    // Predicated region
    $region10: #{tpu_custom_call.1} parent=1 // pred_check
      _
    $region11: #{tpu_custom_call.1} parent=1 // pred_check_branch
      %37 = sbr.rel (0) target = $region13
    $region12: #{tpu_custom_call.1} parent=1 // pred_region
      %39 = vsyncadd [#allocation7], 0
      %s40 = sshll.u32 %s2, 4
      %s41 = int_to_ptr.hbm [resolvable:$true] %s40
      %s42 = sshll.u32 [#allocation8], 4
      %s43 = int_to_ptr.vmem [resolvable:$true] %s42
      %48 = dma.hbm_to_vmem [thread:$0]  %s41, 512, %s43, [#allocation7], 128, 128, 8
    $region13: #{tpu_custom_call.1} parent=1 // pred_fallthru
      _
    // Predicated region
    $region14: #{tpu_custom_call.1} parent=1 // pred_check
      _
    $region15: #{tpu_custom_call.1} parent=1 // pred_check_branch
      %50 = sbr.rel (0) target = $region17
    $region16: #{tpu_custom_call.1} parent=1 // pred_region
      _
    $region17: #{tpu_custom_call.1} parent=1 // pred_fallthru
      _
    // Predicated region
    $region18: #{tpu_custom_call.1} parent=1 // pred_check
      _
    $region19: #{tpu_custom_call.1} parent=1 // pred_check_branch
      %52 = sbr.rel (0) target = $region21
    $region20: #{tpu_custom_call.1} parent=1 // pred_region
      %54 = dma.done [#allocation4], 256
    $region21: #{tpu_custom_call.1} parent=1 // pred_fallthru
      _
    // Predicated region
    $region22: #{tpu_custom_call.1} parent=1 // pred_check
      _
    $region23: #{tpu_custom_call.1} parent=1 // pred_check_branch
      %56 = sbr.rel (0) target = $region25
    $region24: #{tpu_custom_call.1} parent=1 // pred_region
      %58 = dma.done [#allocation7], 16
    $region25: #{tpu_custom_call.1} parent=1 // pred_fallthru
      _
    // Predicated region
    $region26: #{tpu_custom_call.1} parent=1 // pred_check
      _
    $region27: #{tpu_custom_call.1} parent=1 // pred_check_branch
      %60 = sbr.rel (0) target = $region29
    $region28: #{tpu_custom_call.1} parent=1 // pred_region
      %62 = dma.done [#allocation7], 512
    $region29: #{tpu_custom_call.1} parent=1 // pred_fallthru
      _
    %p63 = scmp.eq.s32.totalorder 0, 0
    // Predicated region
    $region30: #{tpu_custom_call.1} parent=1 // pred_check
      %p64 = pneg %p63
    $region31: #{tpu_custom_call.1} parent=1 // pred_check_branch
      %66 = sbr.rel (%p64) target = $region33
    $region32: #{tpu_custom_call.1} parent=1 // pred_region
      %v67 = vld [vmem:[#allocation3] sm:$0xff]
      %v68 = vld [vmem:[#allocation3 + $0x8] sm:$0xff]
      %v69 = vmul.f32 %v67, %v67
      %v70 = vmul.f32 %v68, %v68
      %vm71 = vcmask 261120
      %v72 = vsel %vm71, %v69, 0.0
      %73 = vadd.xlane.f32.xlu0 %v72
      %v74 = vpop.xlane.xlu0 %73
      %v75 = vsel %vm71, %v70, 0.0
      %76 = vadd.xlane.f32.xlu0 %v75
      %v77 = vpop.xlane.xlu0 %76
      %v78 = vrcp.pop 32.0
      %v79 = vmul.f32 32.0, %v78
      %v80 = vsub.f32 1.0, %v79
      %v81 = vmul.f32 %v78, %v80
      %v82 = vadd.f32 %v78, %v81
      %vm83 = vweird.f32 %v78
      %v84 = vsel %vm83, %v78, %v82
      %v85 = vmul.f32 %v74, %v84
      %v86 = vmul.f32 %v77, %v84
      %v87 = vadd.f32 %v85, 1e-06
      %v88 = vadd.f32 %v86, 1e-06
      %v89 = vrsqrt.pop %v87
      %v90 = vmul.f32 %v89, %v87
      %v91 = vmul.f32 %v90, %v89
      %v92 = vmul.f32 0.5, %v91
      %v93 = vsub.f32 1.5, %v92
      %v94 = vmul.f32 %v89, %v93
      %vm95 = vweird.f32 %v87
      %vm96 = vweird.f32 %v89
      %vm97 = vmor %vm95, %vm96
      %v98 = vsel %vm97, %v89, %v94
      %v99 = vrsqrt.pop %v88
      %v100 = vmul.f32 %v99, %v88
      %v101 = vmul.f32 %v100, %v99
      %v102 = vmul.f32 0.5, %v101
      %v103 = vsub.f32 1.5, %v102
      %v104 = vmul.f32 %v99, %v103
      %vm105 = vweird.f32 %v88
      %vm106 = vweird.f32 %v99
      %vm107 = vmor %vm105, %vm106
      %v108 = vsel %vm107, %v99, %v104
      %v109 = vmul.f32 %v67, %v98
      %v110 = vmul.f32 %v68, %v108
      %v111 = vld [vmem:[#allocation6] sm:$0x1]
      %v113 = vperm.slane %v111, 0
      %v115 = vmul.f32 %v113, %v109
      %v116 = vmul.f32 %v113, %v110
      %117 = vst.msk [vmem:[#allocation2] sm:$0xff] %vm71, %v115
      %118 = vst.msk [vmem:[#allocation2 + $0x8] sm:$0xff] %vm71, %v116
    $region33: #{tpu_custom_call.1} parent=1 // pred_fallthru
      _
    %v119 = vld [vmem:[#allocation2] sm:$0xff]
    %v120 = vld [vmem:[#allocation2 + $0x8] sm:$0xff]
    %v121 = vld [vmem:[#allocation8] sm:$0xff]
    %v122 = vld [vmem:[#allocation8 + $0x8] sm:$0xff]
    %v123 = vld [vmem:[#allocation8 + $0x10] sm:$0xff]
    %v124 = vld [vmem:[#allocation8 + $0x18] sm:$0xff]
    %v125 = vld [vmem:[%s3] sm:$0x1]
    %v127 = vperm.slane %v125, 0
    %vm129 = vcmask 261120
    %v131 = vsel %vm129, %v119, 0
    %v134 = vsel %vm129, %v120, 0
    %136 = vmatpush.msra.mxu0 0.0
    %137 = vmatpush.msra.mxu0 0.0
    %138 = vmatpush.msra.mxu0 0.0
    %139 = vmatpush.msra.mxu0 0.0
    %140 = vmatpush.msra.mxu0 0.0
    %141 = vmatpush.msra.mxu0 0.0
    %142 = vmatpush.msra.mxu0 0.0
    %143 = vmatpush.msra.mxu0 0.0
    %144 = vmatpush.msra.mxu0 0.0
    %145 = vmatpush.msra.mxu0 0.0
    %146 = vmatpush.msra.mxu0 0.0
    %147 = vmatpush.msra.mxu0 0.0
    %148 = vmatpush.msra.mxu0 %v124
    %149 = vmatpush.msra.mxu0 %v123
    %150 = vmatpush.msra.mxu0 %v122
    %151 = vmatpush.msra.mxu0 %v121
    %152 = vmatmul.f32.gmra.mxu0 %v131
    %v153 = vpop.f32.mrf.mxu0
    %v154 = vadd.f32 %v127, %v153
    %155 = vmatmul.f32.gmra.mxu0 %v134
    %v156 = vpop.f32.mrf.mxu0
    %v157 = vadd.f32 %v127, %v156
    %158 = vdwg.mxu0
    %v159 = vxor.u32 %v154, 2147483648
    %v160 = vxor.u32 %v157, 2147483648
    %v161 = vmul.f32 %v159, 1.442695
    %v162 = vpow.pop %v161
    %v163 = vmul.f32 %v160, 1.442695
    %v164 = vpow.pop %v163
    %v165 = vadd.f32 %v162, 1.0
    %v166 = vadd.f32 %v164, 1.0
    %v167 = vrcp.pop %v165
    %v168 = vmul.f32 %v165, %v167
    %v169 = vsub.f32 1.0, %v168
    %v170 = vmul.f32 %v167, %v169
    %v171 = vadd.f32 %v167, %v170
    %vm172 = vweird.f32 %v165
    %vm173 = vweird.f32 %v167
    %vm174 = vmor %vm172, %vm173
    %v175 = vsel %vm174, %v167, %v171
    %v176 = vand.u32 2147483647, %v165
    %vm177 = vcmp.eq.f32.partialorder %v176, 8.507059e+37
    %v178 = vand.u32 %v165, 2147483648
    %v179 = vor.u32 1.1754944e-38, %v178
    %v180 = vsel %vm177, %v179, %v175
    %v181 = vmul.f32 1.0, %v180
    %v182 = vrcp.pop %v166
    %v183 = vmul.f32 %v166, %v182
    %v184 = vsub.f32 1.0, %v183
    %v185 = vmul.f32 %v182, %v184
    %v186 = vadd.f32 %v182, %v185
    %vm187 = vweird.f32 %v166
    %vm188 = vweird.f32 %v182
    %vm189 = vmor %vm187, %vm188
    %v190 = vsel %vm189, %v182, %v186
    %v191 = vand.u32 2147483647, %v166
    %vm192 = vcmp.eq.f32.partialorder %v191, 8.507059e+37
    %v193 = vand.u32 %v166, 2147483648
    %v194 = vor.u32 1.1754944e-38, %v193
    %v195 = vsel %vm192, %v194, %v190
    %v196 = vmul.f32 1.0, %v195
    %v197 = vmul.f32 %v154, %v181
    %v198 = vmul.f32 %v157, %v196
    %199 = vst [vmem:[#allocation9] sm:$0xff] %v197
    %200 = vst [vmem:[#allocation9 + $0x8] sm:$0xff] %v198
    // Predicated region
    $region34: #{tpu_custom_call.1} parent=1 // pred_check
      _
    $region35: #{tpu_custom_call.1} parent=1 // pred_check_branch
      %202 = sbr.rel (0) target = $region37
    $region36: #{tpu_custom_call.1} parent=1 // pred_region
      %204 = vsyncadd [#allocation5], 0
      %s205 = sshll.u32 [#allocation9], 4
      %s206 = int_to_ptr.vmem [resolvable:$true] %s205
      %s207 = sshll.u32 %s4, 4
      %s208 = int_to_ptr.hbm [resolvable:$true] %s207
      %213 = dma.vmem_to_hbm [thread:$0]  %s206, 256, %s208, [#allocation5], 128, 128, 8
    $region37: #{tpu_custom_call.1} parent=1 // pred_fallthru
      _
    // Predicated region
    $region38: #{tpu_custom_call.1} parent=1 // pred_check
      _
    $region39: #{tpu_custom_call.1} parent=1 // pred_check_branch
      %215 = sbr.rel (0) target = $region41
    $region40: #{tpu_custom_call.1} parent=1 // pred_region
      %217 = dma.done [#allocation5], 256
    $region41: #{tpu_custom_call.1} parent=1 // pred_fallthru
      _
    %218 = vsyncpa [#allocation4], 1
    %219 = vsyncpa [#allocation7], 1
    %220 = vsyncpa [#allocation5], 1

</llo_original>
